<compile_context>
chip_gen: v6e
topology: v6e:2x2x1
jax: 0.10.0
libtpu: 0.0.40
codegen_flags: <defaults>
</compile_context>

<pallas_src>
import math
import functools
import numpy as np
import jax
import jax.numpy as jnp
from jax.experimental import pallas as pl
from jax.experimental.pallas import tpu as pltpu


# ----------------------------- kernels ---------------------------------------


def _fused_gcn_kernel(x_ref, h0_ref, adjT_ref, w2_ref, out_ref, *, alpha, residual):
    # x_ref, h0_ref : (V, Lb)   columns = folded (n, c, t), lane-dense
    # adjT_ref      : (V, V)    pre-scaled by (1 - alpha)
    # w2_ref        : (C, C)    = theta * W^T + (1 - theta) * I   (valid because C == V)
    # out_ref       : (C, Lb)   lane-dense full-width stores
    x = x_ref[...]
    sup = (jnp.dot(adjT_ref[...], x, preferred_element_type=jnp.float32)
           + alpha * h0_ref[...])
    out = jnp.dot(w2_ref[...], sup, preferred_element_type=jnp.float32)
    if residual:
        out = out + x
    out_ref[...] = out.astype(out_ref.dtype)


def _support_kernel(x_ref, h0_ref, adjT_ref, sup_ref, *, alpha):
    # support^T = adjT_scaled @ x^T + alpha * h0^T        (V, Lb)
    sup_ref[...] = (jnp.dot(adjT_ref[...], x_ref[...],
                            preferred_element_type=jnp.float32)
                    + alpha * h0_ref[...]).astype(sup_ref.dtype)


def _output_kernel(*refs, residual):
    # out^T = W2 @ s2^T (+ x2^T)                          (C, Mb)
    if residual:
        s_ref, x2_ref, w2_ref, out_ref = refs
    else:
        s_ref, w2_ref, out_ref = refs
    out = jnp.dot(w2_ref[...], s_ref[...], preferred_element_type=jnp.float32)
    if residual:
        out = out + x2_ref[...]
    out_ref[...] = out.astype(out_ref.dtype)


# ----------------------------- wrapper ----------------------------------------


def _num_lane_blocks(total_lanes):
    """2-way 'parallel' lane split only on chips with 2 TensorCores (v7x / megacore);
    on single-TC chips (v5e / v6e) a single grid step is strictly better."""
    try:
        kind = jax.devices()[0].device_kind.lower()
    except Exception:
        kind = ""
    dual_tc = any(tag in kind for tag in ("v7", "7x", "v5p")) or (
        "v4" in kind and "lite" not in kind)
    return 2 if (dual_tc and total_lanes % 256 == 0) else 1


def graph_convolution(x, adj, h0, weight, lamda, alpha, l, residual=False):
    """Forward pass of GraphConvolution with variant=False."""
    N, C, T, V = x.shape
    if weight.shape != (C, C):
        # the module's .view round-trip forces out_features == in_features == C
        raise ValueError("GraphConvolution forward requires weight of shape (C, C)")
    theta = float(math.log(lamda / l + 1))
    alpha = float(alpha)

    # One-time (V,V)/(C,C) constant folding (fuses with the adjacency sum/transpose).
    adjT_scaled = ((1.0 - alpha) * (adj[0] + adj[1] + adj[2])).T            # (V, V)
    w2 = theta * weight.T + (1.0 - theta) * jnp.eye(C, dtype=weight.dtype)  # (C, C)

    # Lane-dense, batch-folded activations: X[v, n*C*T + c*T + t] = x[n, c, t, v].
    L = N * C * T
    X = jnp.transpose(x.reshape(N, C * T, V), (2, 0, 1)).reshape(V, L)
    H0 = jnp.transpose(h0.reshape(N, C * T, V), (2, 0, 1)).reshape(V, L)

    parallel = pltpu.CompilerParams(dimension_semantics=("parallel",))

    if C == V:
        # torch's raw .view (C,T,V) -> (T,V,C) is the identity in this transposed
        # layout when C == V, so the whole forward fuses into a single pallas_call
        # (and the W2 = theta*W^T + (1-theta)*I fold is exact here).
        nb = _num_lane_blocks(L)
        Lb = L // nb
        out_fold = pl.pallas_call(
            functools.partial(_fused_gcn_kernel, alpha=alpha,
                              residual=bool(residual)),
            out_shape=jax.ShapeDtypeStruct((C, L), jnp.float32),
            grid=(nb,),
            in_specs=[
                pl.BlockSpec((V, Lb), lambda j: (0, j)),   # X
                pl.BlockSpec((V, Lb), lambda j: (0, j)),   # H0
                pl.BlockSpec((V, V), lambda j: (0, 0)),    # adjT_scaled
                pl.BlockSpec((C, C), lambda j: (0, 0)),    # W2
            ],
            out_specs=pl.BlockSpec((C, Lb), lambda j: (0, j)),
            compiler_params=parallel,
            cost_estimate=pl.CostEstimate(
                flops=2 * L * (V * V + C * C),
                transcendentals=0,
                bytes_accessed=4 * (3 * L * V + V * V + C * C)),
        )(X, H0, adjT_scaled, w2)
        # unfold: out_fold[v, n*C*T + c*T + t] == output[n, c, t, v]
        return jnp.transpose(out_fold.reshape(V, N, C, T), (1, 2, 3, 0))

    # ---------------- general C != V: two calls, relayout done by XLA ------------
    # Kernel A: support^T (batch folded into lanes).
    nb_a = _num_lane_blocks(L)
    Lb = L // nb_a
    sup_fold = pl.pallas_call(
        functools.partial(_support_kernel, alpha=alpha),
        out_shape=jax.ShapeDtypeStruct((V, L), jnp.float32),
        grid=(nb_a,),
        in_specs=[
            pl.BlockSpec((V, Lb), lambda j: (0, j)),
            pl.BlockSpec((V, Lb), lambda j: (0, j)),
            pl.BlockSpec((V, V), lambda j: (0, 0)),
        ],
        out_specs=pl.BlockSpec((V, Lb), lambda j: (0, j)),
        compiler_params=parallel,
        cost_estimate=pl.CostEstimate(
            flops=2 * L * V * V, transcendentals=0,
            bytes_accessed=4 * (3 * L * V + V * V)),
    )(X, H0, adjT_scaled)

    # torch `.view(n, t, v, kc)` == raw reinterpretation of the contiguous (C,T,V)
    # buffer as (T*V, C); done as cheap XLA layout plumbing, NOT inside the kernel.
    M = N * T * V
    sup_nctv = jnp.transpose(sup_fold.reshape(V, N, C, T), (1, 2, 3, 0))     # (N,C,T,V)
    s2t = jnp.transpose(sup_nctv.reshape(N, T * V, C), (2, 0, 1)).reshape(C, M)

    nb_b = _num_lane_blocks(M)
    Mb = M // nb_b
    operands = [s2t]
    in_specs = [pl.BlockSpec((C, Mb), lambda j: (0, j))]
    if residual:
        x2t = jnp.transpose(x.reshape(N, T * V, C), (2, 0, 1)).reshape(C, M)
        operands.append(x2t)
        in_specs.append(pl.BlockSpec((C, Mb), lambda j: (0, j)))
    operands.append(w2)
    in_specs.append(pl.BlockSpec((C, C), lambda j: (0, 0)))

    # Kernel B: out^T = W2 @ s2^T (+ x2^T); the (1-theta)*support term rides in the
    # identity part of W2 (s2^T's leading dim is C in this layout, so the fold is exact).
    out_fold = pl.pallas_call(
        functools.partial(_output_kernel, residual=bool(residual)),
        out_shape=jax.ShapeDtypeStruct((C, M), jnp.float32),
        grid=(nb_b,),
        in_specs=in_specs,
        out_specs=pl.BlockSpec((C, Mb), lambda j: (0, j)),
        compiler_params=parallel,
        cost_estimate=pl.CostEstimate(
            flops=2 * M * C * C, transcendentals=0,
            bytes_accessed=4 * ((2 + int(bool(residual))) * M * C + C * C)),
    )(*operands)

    # unfold + torch's raw view-back to (N, C, T, V)
    return jnp.transpose(out_fold.reshape(C, N, T * V), (1, 2, 0)).reshape(N, C, T, V)


# ----------------------------- reference & test --------------------------------


def _reference(x, adj, h0, weight, lamda, alpha, l, residual=False):
    """Plain-JAX transliteration of the PyTorch forward (variant=False)."""
    theta = math.log(lamda / l + 1)
    h1 = jnp.matmul(x, adj[0])
    h2 = jnp.matmul(x, adj[1])
    h3 = jnp.matmul(x, adj[2])
    hi = h1 + h2 + h3
    support = (1 - alpha) * hi + alpha * h0
    r = support
    n, kc, t, v = support.shape
    s2 = support.reshape(n, t, v, kc)                 # raw .view, not a transpose
    out = jnp.matmul(s2, weight).reshape(n, kc, t, v)
    out = theta * out + (1 - theta) * r
    if residual:
        out = out + x
    return out


if __name__ == "__main__":
    key = jax.random.PRNGKey(0)
    lamda, alpha, l = 0.5, 0.1, 1
    gcn = jax.jit(graph_convolution, static_argnums=(4, 5, 6, 7))

    def run_case(N, C, T, V, residual):
        k1, k2, k3, k4 = jax.random.split(jax.random.fold_in(key, C * 1000 + T), 4)
        x = jax.random.normal(k1, (N, C, T, V), dtype=jnp.float32)
        h0 = jax.random.normal(k2, (N, C, T, V), dtype=jnp.float32)
        adj = jax.random.normal(k3, (3, V, V), dtype=jnp.float32) * 0.1
        # reset_parameters(): uniform(-stdv, stdv), stdv = 1/sqrt(out_features)
        stdv = 1.0 / math.sqrt(C)
        weight = jax.random.uniform(k4, (C, C), dtype=jnp.float32,
                                    minval=-stdv, maxval=stdv)
        out = jax.block_until_ready(gcn(x, adj, h0, weight, lamda, alpha, l, residual))
        ref = jax.block_until_ready(_reference(x, adj, h0, weight, lamda, alpha, l, residual))
        assert out.shape == (N, C, T, V)
        # note: x@(a0+a1+a2) vs x@a0+x@a1+x@a2 differs only by fp reassociation
        assert np.allclose(np.asarray(out), np.asarray(ref), rtol=1e-3, atol=1e-3), \
            (N, C, T, V, residual)

    # C == V: fully fused single-kernel fast path
    run_case(2, 16, 8, 16, False)
    run_case(2, 16, 8, 16, True)
    # C != V: two-kernel path (torch raw-view relayout handled by XLA, not in-kernel)
    run_case(2, 8, 8, 16, False)
    run_case(2, 8, 8, 16, True)

    print("KERNEL_OK")
</pallas_src>

<mosaic_0001>
module attributes {stable_mosaic.version = 11 : i64} {
  func.func @_fused_gcn_kernel(%arg0: i32, %arg1: memref<16x256xf32, #tpu.memory_space<vmem>>, %arg2: memref<16x256xf32, #tpu.memory_space<vmem>>, %arg3: memref<16x16xf32, #tpu.memory_space<vmem>>, %arg4: memref<16x16xf32, #tpu.memory_space<vmem>>, %arg5: memref<16x256xf32, #tpu.memory_space<vmem>>) attributes {dimension_semantics = [#tpu.dimension_semantics<parallel>], iteration_bounds = array<i64: 1>, scalar_prefetch = 0 : i64, scratch_operands = 0 : i64, tpu.core_type = #tpu.core_type<tc>, window_params = [{transform_indices = @transform_0, window_bounds = array<i64: 16, 256>}, {transform_indices = @transform_1, window_bounds = array<i64: 16, 256>}, {pipeline_mode = #tpu.pipeline_mode<synchronous>, transform_indices = @transform_2, window_bounds = array<i64: 16, 16>}, {pipeline_mode = #tpu.pipeline_mode<synchronous>, transform_indices = @transform_3, window_bounds = array<i64: 16, 16>}, {transform_indices = @transform_4, window_bounds = array<i64: 16, 256>}]} {
    %c0 = arith.constant 0 : index
    %c0_0 = arith.constant 0 : index
    %0 = vector.load %arg1[%c0, %c0_0] : memref<16x256xf32, #tpu.memory_space<vmem>>, vector<16x256xf32>
    %c0_1 = arith.constant 0 : index
    %c0_2 = arith.constant 0 : index
    %1 = vector.load %arg3[%c0_1, %c0_2] : memref<16x16xf32, #tpu.memory_space<vmem>>, vector<16x16xf32>
    %cst = arith.constant dense<0.000000e+00> : vector<16x256xf32>
    %2 = tpu.matmul %1, %0, %cst {dimension_numbers = #tpu.dot_dimension_numbers<[1], [0], [0], [1], [0, 0, 1, 1], [], []>} : vector<16x16xf32>, vector<16x256xf32>, vector<16x256xf32> -> vector<16x256xf32>
    %c0_3 = arith.constant 0 : index
    %c0_4 = arith.constant 0 : index
    %3 = vector.load %arg2[%c0_3, %c0_4] : memref<16x256xf32, #tpu.memory_space<vmem>>, vector<16x256xf32>
    %cst_5 = arith.constant 1.000000e-01 : f32
    %4 = vector.broadcast %cst_5 : f32 to vector<16x256xf32>
    %5 = arith.mulf %4, %3 : vector<16x256xf32>
    %6 = arith.addf %2, %5 : vector<16x256xf32>
    %c0_6 = arith.constant 0 : index
    %c0_7 = arith.constant 0 : index
    %7 = vector.load %arg4[%c0_6, %c0_7] : memref<16x16xf32, #tpu.memory_space<vmem>>, vector<16x16xf32>
    %cst_8 = arith.constant dense<0.000000e+00> : vector<16x256xf32>
    %8 = tpu.matmul %7, %6, %cst_8 {dimension_numbers = #tpu.dot_dimension_numbers<[1], [0], [0], [1], [0, 0, 1, 1], [], []>} : vector<16x16xf32>, vector<16x256xf32>, vector<16x256xf32> -> vector<16x256xf32>
    %c0_9 = arith.constant 0 : index
    %c0_10 = arith.constant 0 : index
    %9 = vector.load %arg5[%c0_9, %c0_10] : memref<16x256xf32, #tpu.memory_space<vmem>>, vector<16x256xf32>
    tpu.vector_store %arg5[%c0_9, %c0_10], %8 {strides = array<i32>} : memref<16x256xf32, #tpu.memory_space<vmem>>, vector<16x256xf32>,
    return
  }
  func.func @transform_0(%arg0: i32) -> (i32, i32) {
    %c0_i32 = arith.constant 0 : i32
    %c0_i32_0 = arith.constant 0 : i32
    return %c0_i32, %arg0 : i32, i32
  }
  func.func @transform_1(%arg0: i32) -> (i32, i32) {
    %c0_i32 = arith.constant 0 : i32
    %c0_i32_0 = arith.constant 0 : i32
    return %c0_i32, %arg0 : i32, i32
  }
  func.func @transform_2(%arg0: i32) -> (i32, i32) {
    %c0_i32 = arith.constant 0 : i32
    %c0_i32_0 = arith.constant 0 : i32
    %c0_i32_1 = arith.constant 0 : i32
    return %c0_i32, %c0_i32_0 : i32, i32
  }
  func.func @transform_3(%arg0: i32) -> (i32, i32) {
    %c0_i32 = arith.constant 0 : i32
    %c0_i32_0 = arith.constant 0 : i32
    %c0_i32_1 = arith.constant 0 : i32
    return %c0_i32, %c0_i32_0 : i32, i32
  }
  func.func @transform_4(%arg0: i32) -> (i32, i32) {
    %c0_i32 = arith.constant 0 : i32
    %c0_i32_0 = arith.constant 0 : i32
    return %c0_i32, %arg0 : i32, i32
  }
}

</mosaic_0001>

<llo_original>
// kernel: graph_convolution.1
$region0: #{graph_convolution.1}
  #allocation0 [shape = 'u32[]', space=smem, size = 0x4, offset = 0x4, fixed_abs, tag = 'smem constant byte address 0x4 - core index']
  #allocation1 [shape = 'u32[144,128]{1,0:T(1,128)}', space=vmem, size = 0x12000, scoped, tag = 'internal scratch']
  %s0 = inlined_call_operand.vmem [shape: f32[16,256], index: 0, kind: input, shape index: {}]
  %s1 = inlined_call_operand.vmem [shape: f32[16,256], index: 1, kind: input, shape index: {}]
  %s2 = inlined_call_operand.vmem [shape: f32[16,16], index: 2, kind: input, shape index: {}]
  %s3 = inlined_call_operand.vmem [shape: f32[16,16], index: 3, kind: input, shape index: {}]
  %s4 = inlined_call_operand.vmem [shape: f32[16,256], index: 4, kind: output, shape index: {}]
  %s5 = sld [smem:[#allocation0]]
  $region26: #{graph_convolution.1} parent=0
    _
  %s7 = ssub.s32 1, %s5
  %s8 = scalar_select 0, %s7, %s5
  // Predicated region
  $region2: #{graph_convolution.1} parent=0 // pred_check
    _
  $region3: #{graph_convolution.1} parent=0 // pred_check_branch
    %10 = sbr.rel (0) target = $region5
  $region4: #{graph_convolution.1} parent=0 // pred_region
    _
  $region5: #{graph_convolution.1} parent=0 // pred_fallthru
    _
  // Predicated region
  $region6: #{graph_convolution.1} parent=0 // pred_check
    _
  $region7: #{graph_convolution.1} parent=0 // pred_check_branch
    %12 = sbr.rel (0) target = $region9
  $region8: #{graph_convolution.1} parent=0 // pred_region
    _
  $region9: #{graph_convolution.1} parent=0 // pred_fallthru
    _
  // Predicated region
  $region10: #{graph_convolution.1} parent=0 // pred_check
    _
  $region11: #{graph_convolution.1} parent=0 // pred_check_branch
    %14 = sbr.rel (0) target = $region13
  $region12: #{graph_convolution.1} parent=0 // pred_region
    _
  $region13: #{graph_convolution.1} parent=0 // pred_fallthru
    _
  // Predicated region
  $region14: #{graph_convolution.1} parent=0 // pred_check
    _
  $region15: #{graph_convolution.1} parent=0 // pred_check_branch
    %16 = sbr.rel (0) target = $region17
  $region16: #{graph_convolution.1} parent=0 // pred_region
    _
  $region17: #{graph_convolution.1} parent=0 // pred_fallthru
    _
  %v17 = vld [vmem:[%s0] sm:$0xff]
  %v18 = vld [vmem:[%s0 + $0x8] sm:$0xff]
  %v19 = vld [vmem:[%s0 + $0x10] sm:$0xff]
  %v20 = vld [vmem:[%s0 + $0x18] sm:$0xff]
  %v21 = vld [vmem:[%s2] sm:$0xff]
  %v22 = vld [vmem:[%s2 + $0x8] sm:$0xff]
  %v23 = vld [vmem:[%s1] sm:$0xff]
  %v24 = vld [vmem:[%s1 + $0x8] sm:$0xff]
  %v25 = vld [vmem:[%s1 + $0x10] sm:$0xff]
  %v26 = vld [vmem:[%s1 + $0x18] sm:$0xff]
  %v27 = vmul.f32 %v23, 0.1
  %v28 = vmul.f32 %v24, 0.1
  %v29 = vmul.f32 %v25, 0.1
  %v30 = vmul.f32 %v26, 0.1
  %vm31 = vcmask 130048
  %v33 = vsel %vm31, %v21, 0
  %v36 = vsel %vm31, %v22, 0
  %38 = vmatprep.subr.mxu0 0.0
  %39 = vmatpush1.msra.mxu0 0.0
  %40 = vmatprep.subr.mxu0 0.0
  %41 = vmatpush1.msra.mxu0 0.0
  %42 = vmatprep.subr.mxu0 0.0
  %43 = vmatpush1.msra.mxu0 0.0
  %44 = vmatprep.subr.mxu0 0.0
  %45 = vmatpush1.msra.mxu0 0.0
  %46 = vmatprep.subr.mxu0 0.0
  %47 = vmatpush1.msra.mxu0 0.0
  %48 = vmatprep.subr.mxu0 0.0
  %49 = vmatpush1.msra.mxu0 0.0
  %50 = vmatprep.subr.mxu0 0.0
  %51 = vmatpush1.msra.mxu0 0.0
  %52 = vmatprep.subr.mxu0 0.0
  %53 = vmatpush1.msra.mxu0 0.0
  %54 = vmatprep.subr.mxu0 0.0
  %55 = vmatpush1.msra.mxu0 0.0
  %56 = vmatprep.subr.mxu0 0.0
  %57 = vmatpush1.msra.mxu0 0.0
  %58 = vmatprep.subr.mxu0 0.0
  %59 = vmatpush1.msra.mxu0 0.0
  %60 = vmatprep.subr.mxu0 0.0
  %61 = vmatpush1.msra.mxu0 0.0
  %62 = vmatprep.subr.mxu0 0.0
  %63 = vmatpush1.msra.mxu0 0.0
  %64 = vmatprep.subr.mxu0 0.0
  %65 = vmatpush1.msra.mxu0 0.0
  %66 = vmatprep.subr.mxu0 %v20
  %67 = vmatpush1.msra.mxu0 %v19
  %68 = vmatprep.subr.mxu0 %v18
  %69 = vmatpush1.msra.mxu0 %v17
  %70 = vmatprep.subr.mxu0 0.0
  %71 = vmatpush2.msra.mxu0 0.0
  %72 = vmatprep.subr.mxu0 0.0
  %73 = vmatpush2.msra.mxu0 0.0
  %74 = vmatprep.subr.mxu0 0.0
  %75 = vmatpush2.msra.mxu0 0.0
  %76 = vmatprep.subr.mxu0 0.0
  %77 = vmatpush2.msra.mxu0 0.0
  %78 = vmatprep.subr.mxu0 0.0
  %79 = vmatpush2.msra.mxu0 0.0
  %80 = vmatprep.subr.mxu0 0.0
  %81 = vmatpush2.msra.mxu0 0.0
  %82 = vmatprep.subr.mxu0 0.0
  %83 = vmatpush2.msra.mxu0 0.0
  %84 = vmatprep.subr.mxu0 0.0
  %85 = vmatpush2.msra.mxu0 0.0
  %86 = vmatprep.subr.mxu0 0.0
  %87 = vmatpush2.msra.mxu0 0.0
  %88 = vmatprep.subr.mxu0 0.0
  %89 = vmatpush2.msra.mxu0 0.0
  %90 = vmatprep.subr.mxu0 0.0
  %91 = vmatpush2.msra.mxu0 0.0
  %92 = vmatprep.subr.mxu0 0.0
  %93 = vmatpush2.msra.mxu0 0.0
  %94 = vmatprep.subr.mxu0 0.0
  %95 = vmatpush2.msra.mxu0 0.0
  %96 = vmatprep.subr.mxu0 0.0
  %97 = vmatpush2.msra.mxu0 0.0
  %98 = vmatprep.subr.mxu0 0.0
  %99 = vmatpush2.msra.mxu0 0.0
  %100 = vmatprep.subr.mxu0 0.0
  %101 = vmatpush2.msra.mxu0 0.0
  %102 = vmatprep.mubr.f32.mxu0 0.0
  %103 = vmatmul.mubr.f32.gmra.mxu0 %v33
  %v104 = vpop.f32.mrf.mxu0
  %v105 = vadd.f32 %v27, %v104
  %v106 = vpop.f32.mrf.mxu0
  %v107 = vadd.f32 %v28, %v106
  %108 = vmatprep.mubr.f32.mxu0 0.0
  %109 = vmatmul.mubr.f32.gmra.mxu0 %v36
  %v110 = vpop.f32.mrf.mxu0
  %v111 = vadd.f32 %v29, %v110
  %v112 = vpop.f32.mrf.mxu0
  %v113 = vadd.f32 %v30, %v112
  %114 = vdwg.mxu0
  %v115 = vld [vmem:[%s3] sm:$0xff]
  %v116 = vld [vmem:[%s3 + $0x8] sm:$0xff]
  %v118 = vsel %vm31, %v115, 0
  %v121 = vsel %vm31, %v116, 0
  %123 = vmatprep.subr.mxu0 0.0
  %124 = vmatpush1.msra.mxu0 0.0
  %125 = vmatprep.subr.mxu0 0.0
  %126 = vmatpush1.msra.mxu0 0.0
  %127 = vmatprep.subr.mxu0 0.0
  %128 = vmatpush1.msra.mxu0 0.0
  %129 = vmatprep.subr.mxu0 0.0
  %130 = vmatpush1.msra.mxu0 0.0
  %131 = vmatprep.subr.mxu0 0.0
  %132 = vmatpush1.msra.mxu0 0.0
  %133 = vmatprep.subr.mxu0 0.0
  %134 = vmatpush1.msra.mxu0 0.0
  %135 = vmatprep.subr.mxu0 0.0
  %136 = vmatpush1.msra.mxu0 0.0
  %137 = vmatprep.subr.mxu0 0.0
  %138 = vmatpush1.msra.mxu0 0.0
  %139 = vmatprep.subr.mxu0 0.0
  %140 = vmatpush1.msra.mxu0 0.0
  %141 = vmatprep.subr.mxu0 0.0
  %142 = vmatpush1.msra.mxu0 0.0
  %143 = vmatprep.subr.mxu0 0.0
  %144 = vmatpush1.msra.mxu0 0.0
  %145 = vmatprep.subr.mxu0 0.0
  %146 = vmatpush1.msra.mxu0 0.0
  %147 = vmatprep.subr.mxu0 0.0
  %148 = vmatpush1.msra.mxu0 0.0
  %149 = vmatprep.subr.mxu0 0.0
  %150 = vmatpush1.msra.mxu0 0.0
  %151 = vmatprep.subr.mxu0 %v113
  %152 = vmatpush1.msra.mxu0 %v111
  %153 = vmatprep.subr.mxu0 %v107
  %154 = vmatpush1.msra.mxu0 %v105
  %155 = vmatprep.subr.mxu0 0.0
  %156 = vmatpush2.msra.mxu0 0.0
  %157 = vmatprep.subr.mxu0 0.0
  %158 = vmatpush2.msra.mxu0 0.0
  %159 = vmatprep.subr.mxu0 0.0
  %160 = vmatpush2.msra.mxu0 0.0
  %161 = vmatprep.subr.mxu0 0.0
  %162 = vmatpush2.msra.mxu0 0.0
  %163 = vmatprep.subr.mxu0 0.0
  %164 = vmatpush2.msra.mxu0 0.0
  %165 = vmatprep.subr.mxu0 0.0
  %166 = vmatpush2.msra.mxu0 0.0
  %167 = vmatprep.subr.mxu0 0.0
  %168 = vmatpush2.msra.mxu0 0.0
  %169 = vmatprep.subr.mxu0 0.0
  %170 = vmatpush2.msra.mxu0 0.0
  %171 = vmatprep.subr.mxu0 0.0
  %172 = vmatpush2.msra.mxu0 0.0
  %173 = vmatprep.subr.mxu0 0.0
  %174 = vmatpush2.msra.mxu0 0.0
  %175 = vmatprep.subr.mxu0 0.0
  %176 = vmatpush2.msra.mxu0 0.0
  %177 = vmatprep.subr.mxu0 0.0
  %178 = vmatpush2.msra.mxu0 0.0
  %179 = vmatprep.subr.mxu0 0.0
  %180 = vmatpush2.msra.mxu0 0.0
  %181 = vmatprep.subr.mxu0 0.0
  %182 = vmatpush2.msra.mxu0 0.0
  %183 = vmatprep.subr.mxu0 0.0
  %184 = vmatpush2.msra.mxu0 0.0
  %185 = vmatprep.subr.mxu0 0.0
  %186 = vmatpush2.msra.mxu0 0.0
  %187 = vmatprep.mubr.f32.mxu0 0.0
  %188 = vmatmul.mubr.f32.gmra.mxu0 %v118
  %v189 = vpop.f32.mrf.mxu0
  %v190 = vadd.f32 0.0, %v189
  %v191 = vpop.f32.mrf.mxu0
  %v192 = vadd.f32 0.0, %v191
  %193 = vmatprep.mubr.f32.mxu0 0.0
  %194 = vmatmul.mubr.f32.gmra.mxu0 %v121
  %v195 = vpop.f32.mrf.mxu0
  %v196 = vadd.f32 0.0, %v195
  %v197 = vpop.f32.mrf.mxu0
  %v198 = vadd.f32 0.0, %v197
  %199 = vdwg.mxu0
  %200 = vst [vmem:[%s4] sm:$0xff] %v190
  %201 = vst [vmem:[%s4 + $0x8] sm:$0xff] %v192
  %202 = vst [vmem:[%s4 + $0x10] sm:$0xff] %v196
  %203 = vst [vmem:[%s4 + $0x18] sm:$0xff] %v198
  // Predicated region
  $region18: #{graph_convolution.1} parent=0 // pred_check
    _
  $region19: #{graph_convolution.1} parent=0 // pred_check_branch
    %205 = sbr.rel (0) target = $region21
  $region20: #{graph_convolution.1} parent=0 // pred_region
    _
  $region21: #{graph_convolution.1} parent=0 // pred_fallthru
    _
  // Predicated region
  $region22: #{graph_convolution.1} parent=0 // pred_check
    _
  $region23: #{graph_convolution.1} parent=0 // pred_check_branch
    %207 = sbr.rel (0) target = $region25
  $region24: #{graph_convolution.1} parent=0 // pred_region
    _
  $region25: #{graph_convolution.1} parent=0 // pred_fallthru
    _

</llo_original>
